<compile_context>
chip_gen: v5e
topology: v5e:2x2
jax: 0.10.0
libtpu: 0.0.40
codegen_flags: <defaults>
</compile_context>

<pallas_src>
import functools

import jax
import jax.numpy as jnp
from jax.experimental import pallas as pl
from jax.experimental.pallas import tpu as pltpu

LANES = 128
SUBLANES = 8
DEFAULT_TILE_ROWS = 1024     # rows (of 128 lanes) per grid step; x block = C*1024*128*4B = 2 MiB f32
DEFAULT_CHUNK_ROWS = 32      # rows per fused exp->select->accumulate chunk (vreg scale)
PAD_LOGIT = -1e4             # exp(-1e4) == 0.0 exactly in f32 (representable in bf16/f16)


def _round_up(a, b):
    return (a + b - 1) // b * b


def _plan_tiling(hw, target_rows, chunk):
    """Pick (rows_padded, tile_rows, n_row_blocks, chunk_rows).

    Pads only to a multiple of 8*128 (plus at most ~n_blocks*chunk rows so
    equal-sized blocks divide evenly) — never to a full tile like before.
    """
    rows = _round_up(pl.cdiv(hw, LANES), SUBLANES)       # minimal sublane alignment
    if rows <= target_rows:
        tr, nj = rows, 1
        ck = min(chunk, tr)
        while tr % ck:                                    # tr, ck multiples of 8 -> terminates
            ck -= SUBLANES
    else:
        nj = pl.cdiv(rows, target_rows)
        ck = chunk
        tr = _round_up(pl.cdiv(rows, nj), ck)             # equal blocks, divisible by chunk
        rows = nj * tr
    return rows, tr, nj, ck


def _dice_kernel(x_ref, t_ref, o_ref, acc_ref, *, class_num, chunk_rows):
    # Every grid step is fully independent ("parallel" on both axes): it
    # produces the per-class {sum(exp), sum(t==c), sum(exp*(t==c))} partial
    # sums of its own block and stores them lane-dense in o_ref.
    tr = x_ref.shape[2]
    n_chunks = tr // chunk_rows

    acc_ref[...] = jnp.zeros_like(acc_ref)                # per-step init (no cross-step carry)

    def rowsum(v):                                        # (chunk,128) f32 -> (8,128): VPU adds
        return v.reshape(chunk_rows // SUBLANES, SUBLANES, LANES).sum(axis=0)

    @pl.loop(0, n_chunks)
    def _(ci):
        base = pl.multiple_of(ci * chunk_rows, chunk_rows)
        t = t_ref[0, pl.ds(base, chunk_rows), :]          # (chunk,128) int32, shared over classes
        for c in range(class_num):                        # small static unroll (C == 4)
            # Fused per-chunk: upcast -> exp -> select -> accumulate.
            # No (C, TR, 128) exp temporary is ever materialized.
            e = jnp.exp(x_ref[0, c, pl.ds(base, chunk_rows), :].astype(jnp.float32))
            match = t == c                                # padding label -1 never matches
            acc_ref[3 * c + 0] += rowsum(e)                         # sum(exp(x_c))
            acc_ref[3 * c + 1] += rowsum(jnp.where(match, 1.0, 0.0))  # sum(t==c)
            acc_ref[3 * c + 2] += rowsum(jnp.where(match, e, 0.0))    # intersect

    # One cross-sublane reduction per stream at the end of the step; the store
    # is lane-dense (last dim 128).
    o_ref[0, 0] = acc_ref[...].sum(axis=1)                # (3*class_num, 128)


def multi_dice_loss(inputs, target, class_num=4, smooth=0.001,
                    tile_rows=DEFAULT_TILE_ROWS, chunk_rows=DEFAULT_CHUNK_ROWS):
    """Pallas TPU Multi_DiceLoss forward.

    inputs: (B, C, H, W) log-probabilities (any float dtype; kept narrow),
    target: (B, H, W) integer class labels. Returns a scalar loss.
    """
    B, C, H, W = inputs.shape
    assert C >= class_num
    assert target.shape == (B, H, W)
    HW = H * W

    rows, tr, nj, ck = _plan_tiling(HW, tile_rows, chunk_rows)
    HW_pad = rows * LANES

    x = inputs[:, :class_num].reshape(B, class_num, HW)   # original dtype preserved
    t = target.reshape(B, HW)
    if t.dtype != jnp.int32:
        t = t.astype(jnp.int32)

    pad = HW_pad - HW
    if pad:
        # Sentinel padding: exp(PAD_LOGIT)==0 and label -1 matches no class, so
        # the hot loop needs no iota/compare/mask. Skipped entirely when HW is
        # already (8*128)-aligned.
        x = jnp.pad(x, ((0, 0), (0, 0), (0, pad)), constant_values=PAD_LOGIT)
        t = jnp.pad(t, ((0, 0), (0, pad)), constant_values=-1)

    x = x.reshape(B, class_num, rows, LANES)
    t = t.reshape(B, rows, LANES)

    kernel = functools.partial(_dice_kernel, class_num=class_num, chunk_rows=ck)

    partials = pl.pallas_call(
        kernel,
        out_shape=jax.ShapeDtypeStruct((B, nj, 3 * class_num, LANES), jnp.float32),
        grid_spec=pltpu.PrefetchScalarGridSpec(
            num_scalar_prefetch=0,
            grid=(B, nj),
            in_specs=[
                pl.BlockSpec((1, class_num, tr, LANES), lambda b, j: (b, 0, j, 0)),
                pl.BlockSpec((1, tr, LANES), lambda b, j: (b, j, 0)),
            ],
            out_specs=pl.BlockSpec((1, 1, 3 * class_num, LANES),
                                   lambda b, j: (b, j, 0, 0)),
            scratch_shapes=[
                pltpu.VMEM((3 * class_num, SUBLANES, LANES), jnp.float32),
            ],
        ),
        compiler_params=pltpu.CompilerParams(
            dimension_semantics=("parallel", "parallel")),
    )(x, t)

    # Tiny epilogue in plain JAX: reduce the partial sums to 3*class_num
    # scalars and apply the dice formula.
    sums = partials.sum(axis=(0, 1, 3)).reshape(class_num, 3)
    s_in, s_tg, inter = sums[:, 0], sums[:, 1], sums[:, 2]
    smooth = jnp.float32(smooth)
    dice = jnp.sum((2.0 * inter + smooth) / (s_in + s_tg + smooth))
    return 1.0 - dice / class_num


def multi_dice_loss_ref(inputs, target, class_num=4, smooth=0.001):
    inp = jnp.exp(inputs.astype(jnp.float32))
    dice = jnp.float32(0.0)
    for i in range(class_num):
        input_i = inp[:, i, :, :]
        target_i = (target == i).astype(jnp.float32)
        intersect = jnp.sum(input_i * target_i)
        union = jnp.sum(input_i) + jnp.sum(target_i)
        dice = dice + (2.0 * intersect + smooth) / (union + smooth)
    return 1.0 - dice / class_num


if __name__ == "__main__":
    key = jax.random.PRNGKey(0)
    k1, k2, k3, k4 = jax.random.split(key, 4)

    # Test 1: small spatial size (exercises the sentinel-padded ragged tail).
    B, C, H, W = 2, 4, 16, 16
    logits = jax.random.normal(k1, (B, C, H, W), dtype=jnp.float32)
    log_probs = jax.nn.log_softmax(logits, axis=1)       # typical input to this loss
    target = jax.random.randint(k2, (B, H, W), 0, C)

    out = multi_dice_loss(log_probs, target)
    out = jax.block_until_ready(out)
    ref = multi_dice_loss_ref(log_probs, target)
    assert jnp.allclose(out, ref, rtol=1e-5, atol=1e-5), (out, ref)

    # Test 2: aligned spatial size, forced multi-block grid (no padding,
    # exercises nj > 1 and the in-kernel chunk loop).
    B2, H2, W2 = 2, 64, 64
    logits2 = jax.random.normal(k3, (B2, C, H2, W2), dtype=jnp.float32)
    log_probs2 = jax.nn.log_softmax(logits2, axis=1)
    target2 = jax.random.randint(k4, (B2, H2, W2), 0, C)

    out2 = multi_dice_loss(log_probs2, target2, tile_rows=16, chunk_rows=8)
    out2 = jax.block_until_ready(out2)
    ref2 = multi_dice_loss_ref(log_probs2, target2)
    assert jnp.allclose(out2, ref2, rtol=1e-5, atol=1e-5), (out2, ref2)

    print("KERNEL_OK")
</pallas_src>

<mosaic_0001>
module attributes {stable_mosaic.version = 11 : i64} {
  func.func @_dice_kernel(%arg0: i32, %arg1: i32, %arg2: memref<1x4x8x128xf32, #tpu.memory_space<vmem>>, %arg3: memref<1x8x128xi32, #tpu.memory_space<vmem>>, %arg4: memref<1x1x12x128xf32, #tpu.memory_space<vmem>>, %arg5: memref<12x8x128xf32, #tpu.memory_space<vmem>>) attributes {dimension_semantics = [#tpu.dimension_semantics<parallel>, #tpu.dimension_semantics<parallel>], iteration_bounds = array<i64: 2, 1>, scalar_prefetch = 0 : i64, scratch_operands = 1 : i64, tpu.core_type = #tpu.core_type<tc>, window_params = [{transform_indices = @transform_0, window_bounds = array<i64: 1, 4, 8, 128>}, {transform_indices = @transform_1, window_bounds = array<i64: 1, 8, 128>}, {transform_indices = @transform_2, window_bounds = array<i64: 1, 1, 12, 128>}]} {
    %cst = arith.constant 0.000000e+00 : f32
    %0 = vector.broadcast %cst : f32 to vector<12x8x128xf32>
    %c0 = arith.constant 0 : index
    %c0_0 = arith.constant 0 : index
    %c0_1 = arith.constant 0 : index
    %1 = vector.load %arg5[%c0, %c0_0, %c0_1] : memref<12x8x128xf32, #tpu.memory_space<vmem>>, vector<12x8x128xf32>
    tpu.vector_store %arg5[%c0, %c0_0, %c0_1], %0 {strides = array<i32>} : memref<12x8x128xf32, #tpu.memory_space<vmem>>, vector<12x8x128xf32>,
    %c0_i32 = arith.constant 0 : i32
    %c1_i32 = arith.constant 1 : i32
    %2 = arith.muli %c0_i32, %c1_i32 : i32
    %c0_i32_2 = arith.constant 0 : i32
    %3 = arith.addi %c0_i32_2, %2 : i32
    %c8_i32 = arith.constant 8 : i32
    %4 = arith.muli %3, %c8_i32 : i32
    %5 = tpu.assume_multiple %4, 8 : i32
    %c0_3 = arith.constant 0 : index
    %6 = arith.index_cast %5 : i32 to index
    %c0_4 = arith.constant 0 : index
    %7 = vector.load %arg3[%c0_3, %6, %c0_4] : memref<1x8x128xi32, #tpu.memory_space<vmem>>, vector<1x8x128xi32>
    %8 = vector.shape_cast %7 : vector<1x8x128xi32> to vector<8x128xi32>
    %c0_5 = arith.constant 0 : index
    %c0_6 = arith.constant 0 : index
    %9 = arith.index_cast %5 : i32 to index
    %c0_7 = arith.constant 0 : index
    %10 = vector.load %arg2[%c0_5, %c0_6, %9, %c0_7] : memref<1x4x8x128xf32, #tpu.memory_space<vmem>>, vector<1x1x8x128xf32>
    %11 = vector.shape_cast %10 : vector<1x1x8x128xf32> to vector<8x128xf32>
    %12 = math.exp %11 : vector<8x128xf32>
    %c0_i32_8 = arith.constant 0 : i32
    %13 = vector.broadcast %c0_i32_8 : i32 to vector<8x128xi32>
    %14 = arith.cmpi eq, %8, %13 : vector<8x128xi32>
    %c0_9 = arith.constant 0 : index
    %c0_10 = arith.constant 0 : index
    %c0_11 = arith.constant 0 : index
    %15 = vector.load %arg5[%c0_9, %c0_10, %c0_11] : memref<12x8x128xf32, #tpu.memory_space<vmem>>, vector<1x8x128xf32>
    %16 = vector.shape_cast %15 : vector<1x8x128xf32> to vector<8x128xf32>
    %17 = vector.shape_cast %12 : vector<8x128xf32> to vector<1x8x128xf32>
    %cst_12 = arith.constant dense<0.000000e+00> : vector<8x128xf32>
    %18 = vector.multi_reduction <add>, %17, %cst_12 [0] : vector<1x8x128xf32> to vector<8x128xf32>
    %19 = arith.addf %16, %18 : vector<8x128xf32>
    %c0_13 = arith.constant 0 : index
    %c0_14 = arith.constant 0 : index
    %c0_15 = arith.constant 0 : index
    %20 = vector.load %arg5[%c0_13, %c0_14, %c0_15] : memref<12x8x128xf32, #tpu.memory_space<vmem>>, vector<1x8x128xf32>
    %21 = vector.shape_cast %20 : vector<1x8x128xf32> to vector<8x128xf32>
    %22 = vector.shape_cast %19 : vector<8x128xf32> to vector<1x8x128xf32>
    tpu.vector_store %arg5[%c0_13, %c0_14, %c0_15], %22 {strides = array<i32>} : memref<12x8x128xf32, #tpu.memory_space<vmem>>, vector<1x8x128xf32>,
    %c1 = arith.constant 1 : index
    %c0_16 = arith.constant 0 : index
    %c0_17 = arith.constant 0 : index
    %23 = vector.load %arg5[%c1, %c0_16, %c0_17] : memref<12x8x128xf32, #tpu.memory_space<vmem>>, vector<1x8x128xf32>
    %24 = vector.shape_cast %23 : vector<1x8x128xf32> to vector<8x128xf32>
    %cst_18 = arith.constant 1.000000e+00 : f32
    %cst_19 = arith.constant 0.000000e+00 : f32
    %25 = vector.broadcast %cst_18 : f32 to vector<8x128xf32>
    %26 = vector.broadcast %cst_19 : f32 to vector<8x128xf32>
    %27 = arith.select %14, %25, %26 : vector<8x128xi1>, vector<8x128xf32>
    %28 = vector.shape_cast %27 : vector<8x128xf32> to vector<1x8x128xf32>
    %cst_20 = arith.constant dense<0.000000e+00> : vector<8x128xf32>
    %29 = vector.multi_reduction <add>, %28, %cst_20 [0] : vector<1x8x128xf32> to vector<8x128xf32>
    %30 = arith.addf %24, %29 : vector<8x128xf32>
    %c1_21 = arith.constant 1 : index
    %c0_22 = arith.constant 0 : index
    %c0_23 = arith.constant 0 : index
    %31 = vector.load %arg5[%c1_21, %c0_22, %c0_23] : memref<12x8x128xf32, #tpu.memory_space<vmem>>, vector<1x8x128xf32>
    %32 = vector.shape_cast %31 : vector<1x8x128xf32> to vector<8x128xf32>
    %33 = vector.shape_cast %30 : vector<8x128xf32> to vector<1x8x128xf32>
    tpu.vector_store %arg5[%c1_21, %c0_22, %c0_23], %33 {strides = array<i32>} : memref<12x8x128xf32, #tpu.memory_space<vmem>>, vector<1x8x128xf32>,
    %c2 = arith.constant 2 : index
    %c0_24 = arith.constant 0 : index
    %c0_25 = arith.constant 0 : index
    %34 = vector.load %arg5[%c2, %c0_24, %c0_25] : memref<12x8x128xf32, #tpu.memory_space<vmem>>, vector<1x8x128xf32>
    %35 = vector.shape_cast %34 : vector<1x8x128xf32> to vector<8x128xf32>
    %cst_26 = arith.constant 0.000000e+00 : f32
    %36 = vector.broadcast %cst_26 : f32 to vector<8x128xf32>
    %37 = arith.select %14, %12, %36 : vector<8x128xi1>, vector<8x128xf32>
    %38 = vector.shape_cast %37 : vector<8x128xf32> to vector<1x8x128xf32>
    %cst_27 = arith.constant dense<0.000000e+00> : vector<8x128xf32>
    %39 = vector.multi_reduction <add>, %38, %cst_27 [0] : vector<1x8x128xf32> to vector<8x128xf32>
    %40 = arith.addf %35, %39 : vector<8x128xf32>
    %c2_28 = arith.constant 2 : index
    %c0_29 = arith.constant 0 : index
    %c0_30 = arith.constant 0 : index
    %41 = vector.load %arg5[%c2_28, %c0_29, %c0_30] : memref<12x8x128xf32, #tpu.memory_space<vmem>>, vector<1x8x128xf32>
    %42 = vector.shape_cast %41 : vector<1x8x128xf32> to vector<8x128xf32>
    %43 = vector.shape_cast %40 : vector<8x128xf32> to vector<1x8x128xf32>
    tpu.vector_store %arg5[%c2_28, %c0_29, %c0_30], %43 {strides = array<i32>} : memref<12x8x128xf32, #tpu.memory_space<vmem>>, vector<1x8x128xf32>,
    %c0_31 = arith.constant 0 : index
    %c1_32 = arith.constant 1 : index
    %44 = arith.index_cast %5 : i32 to index
    %c0_33 = arith.constant 0 : index
    %45 = vector.load %arg2[%c0_31, %c1_32, %44, %c0_33] : memref<1x4x8x128xf32, #tpu.memory_space<vmem>>, vector<1x1x8x128xf32>
    %46 = vector.shape_cast %45 : vector<1x1x8x128xf32> to vector<8x128xf32>
    %47 = math.exp %46 : vector<8x128xf32>
    %c1_i32_34 = arith.constant 1 : i32
    %48 = vector.broadcast %c1_i32_34 : i32 to vector<8x128xi32>
    %49 = arith.cmpi eq, %8, %48 : vector<8x128xi32>
    %c3 = arith.constant 3 : index
    %c0_35 = arith.constant 0 : index
    %c0_36 = arith.constant 0 : index
    %50 = vector.load %arg5[%c3, %c0_35, %c0_36] : memref<12x8x128xf32, #tpu.memory_space<vmem>>, vector<1x8x128xf32>
    %51 = vector.shape_cast %50 : vector<1x8x128xf32> to vector<8x128xf32>
    %52 = vector.shape_cast %47 : vector<8x128xf32> to vector<1x8x128xf32>
    %cst_37 = arith.constant dense<0.000000e+00> : vector<8x128xf32>
    %53 = vector.multi_reduction <add>, %52, %cst_37 [0] : vector<1x8x128xf32> to vector<8x128xf32>
    %54 = arith.addf %51, %53 : vector<8x128xf32>
    %c3_38 = arith.constant 3 : index
    %c0_39 = arith.constant 0 : index
    %c0_40 = arith.constant 0 : index
    %55 = vector.load %arg5[%c3_38, %c0_39, %c0_40] : memref<12x8x128xf32, #tpu.memory_space<vmem>>, vector<1x8x128xf32>
    %56 = vector.shape_cast %55 : vector<1x8x128xf32> to vector<8x128xf32>
    %57 = vector.shape_cast %54 : vector<8x128xf32> to vector<1x8x128xf32>
    tpu.vector_store %arg5[%c3_38, %c0_39, %c0_40], %57 {strides = array<i32>} : memref<12x8x128xf32, #tpu.memory_space<vmem>>, vector<1x8x128xf32>,
    %c4 = arith.constant 4 : index
    %c0_41 = arith.constant 0 : index
    %c0_42 = arith.constant 0 : index
    %58 = vector.load %arg5[%c4, %c0_41, %c0_42] : memref<12x8x128xf32, #tpu.memory_space<vmem>>, vector<1x8x128xf32>
    %59 = vector.shape_cast %58 : vector<1x8x128xf32> to vector<8x128xf32>
    %cst_43 = arith.constant 1.000000e+00 : f32
    %cst_44 = arith.constant 0.000000e+00 : f32
    %60 = vector.broadcast %cst_43 : f32 to vector<8x128xf32>
    %61 = vector.broadcast %cst_44 : f32 to vector<8x128xf32>
    %62 = arith.select %49, %60, %61 : vector<8x128xi1>, vector<8x128xf32>
    %63 = vector.shape_cast %62 : vector<8x128xf32> to vector<1x8x128xf32>
    %cst_45 = arith.constant dense<0.000000e+00> : vector<8x128xf32>
    %64 = vector.multi_reduction <add>, %63, %cst_45 [0] : vector<1x8x128xf32> to vector<8x128xf32>
    %65 = arith.addf %59, %64 : vector<8x128xf32>
    %c4_46 = arith.constant 4 : index
    %c0_47 = arith.constant 0 : index
    %c0_48 = arith.constant 0 : index
    %66 = vector.load %arg5[%c4_46, %c0_47, %c0_48] : memref<12x8x128xf32, #tpu.memory_space<vmem>>, vector<1x8x128xf32>
    %67 = vector.shape_cast %66 : vector<1x8x128xf32> to vector<8x128xf32>
    %68 = vector.shape_cast %65 : vector<8x128xf32> to vector<1x8x128xf32>
    tpu.vector_store %arg5[%c4_46, %c0_47, %c0_48], %68 {strides = array<i32>} : memref<12x8x128xf32, #tpu.memory_space<vmem>>, vector<1x8x128xf32>,
    %c5 = arith.constant 5 : index
    %c0_49 = arith.constant 0 : index
    %c0_50 = arith.constant 0 : index
    %69 = vector.load %arg5[%c5, %c0_49, %c0_50] : memref<12x8x128xf32, #tpu.memory_space<vmem>>, vector<1x8x128xf32>
    %70 = vector.shape_cast %69 : vector<1x8x128xf32> to vector<8x128xf32>
    %cst_51 = arith.constant 0.000000e+00 : f32
    %71 = vector.broadcast %cst_51 : f32 to vector<8x128xf32>
    %72 = arith.select %49, %47, %71 : vector<8x128xi1>, vector<8x128xf32>
    %73 = vector.shape_cast %72 : vector<8x128xf32> to vector<1x8x128xf32>
    %cst_52 = arith.constant dense<0.000000e+00> : vector<8x128xf32>
    %74 = vector.multi_reduction <add>, %73, %cst_52 [0] : vector<1x8x128xf32> to vector<8x128xf32>
    %75 = arith.addf %70, %74 : vector<8x128xf32>
    %c5_53 = arith.constant 5 : index
    %c0_54 = arith.constant 0 : index
    %c0_55 = arith.constant 0 : index
    %76 = vector.load %arg5[%c5_53, %c0_54, %c0_55] : memref<12x8x128xf32, #tpu.memory_space<vmem>>, vector<1x8x128xf32>
    %77 = vector.shape_cast %76 : vector<1x8x128xf32> to vector<8x128xf32>
    %78 = vector.shape_cast %75 : vector<8x128xf32> to vector<1x8x128xf32>
    tpu.vector_store %arg5[%c5_53, %c0_54, %c0_55], %78 {strides = array<i32>} : memref<12x8x128xf32, #tpu.memory_space<vmem>>, vector<1x8x128xf32>,
    %c0_56 = arith.constant 0 : index
    %c2_57 = arith.constant 2 : index
    %79 = arith.index_cast %5 : i32 to index
    %c0_58 = arith.constant 0 : index
    %80 = vector.load %arg2[%c0_56, %c2_57, %79, %c0_58] : memref<1x4x8x128xf32, #tpu.memory_space<vmem>>, vector<1x1x8x128xf32>
    %81 = vector.shape_cast %80 : vector<1x1x8x128xf32> to vector<8x128xf32>
    %82 = math.exp %81 : vector<8x128xf32>
    %c2_i32 = arith.constant 2 : i32
    %83 = vector.broadcast %c2_i32 : i32 to vector<8x128xi32>
    %84 = arith.cmpi eq, %8, %83 : vector<8x128xi32>
    %c6 = arith.constant 6 : index
    %c0_59 = arith.constant 0 : index
    %c0_60 = arith.constant 0 : index
    %85 = vector.load %arg5[%c6, %c0_59, %c0_60] : memref<12x8x128xf32, #tpu.memory_space<vmem>>, vector<1x8x128xf32>
    %86 = vector.shape_cast %85 : vector<1x8x128xf32> to vector<8x128xf32>
    %87 = vector.shape_cast %82 : vector<8x128xf32> to vector<1x8x128xf32>
    %cst_61 = arith.constant dense<0.000000e+00> : vector<8x128xf32>
    %88 = vector.multi_reduction <add>, %87, %cst_61 [0] : vector<1x8x128xf32> to vector<8x128xf32>
    %89 = arith.addf %86, %88 : vector<8x128xf32>
    %c6_62 = arith.constant 6 : index
    %c0_63 = arith.constant 0 : index
    %c0_64 = arith.constant 0 : index
    %90 = vector.load %arg5[%c6_62, %c0_63, %c0_64] : memref<12x8x128xf32, #tpu.memory_space<vmem>>, vector<1x8x128xf32>
    %91 = vector.shape_cast %90 : vector<1x8x128xf32> to vector<8x128xf32>
    %92 = vector.shape_cast %89 : vector<8x128xf32> to vector<1x8x128xf32>
    tpu.vector_store %arg5[%c6_62, %c0_63, %c0_64], %92 {strides = array<i32>} : memref<12x8x128xf32, #tpu.memory_space<vmem>>, vector<1x8x128xf32>,
    %c7 = arith.constant 7 : index
    %c0_65 = arith.constant 0 : index
    %c0_66 = arith.constant 0 : index
    %93 = vector.load %arg5[%c7, %c0_65, %c0_66] : memref<12x8x128xf32, #tpu.memory_space<vmem>>, vector<1x8x128xf32>
    %94 = vector.shape_cast %93 : vector<1x8x128xf32> to vector<8x128xf32>
    %cst_67 = arith.constant 1.000000e+00 : f32
    %cst_68 = arith.constant 0.000000e+00 : f32
    %95 = vector.broadcast %cst_67 : f32 to vector<8x128xf32>
    %96 = vector.broadcast %cst_68 : f32 to vector<8x128xf32>
    %97 = arith.select %84, %95, %96 : vector<8x128xi1>, vector<8x128xf32>
    %98 = vector.shape_cast %97 : vector<8x128xf32> to vector<1x8x128xf32>
    %cst_69 = arith.constant dense<0.000000e+00> : vector<8x128xf32>
    %99 = vector.multi_reduction <add>, %98, %cst_69 [0] : vector<1x8x128xf32> to vector<8x128xf32>
    %100 = arith.addf %94, %99 : vector<8x128xf32>
    %c7_70 = arith.constant 7 : index
    %c0_71 = arith.constant 0 : index
    %c0_72 = arith.constant 0 : index
    %101 = vector.load %arg5[%c7_70, %c0_71, %c0_72] : memref<12x8x128xf32, #tpu.memory_space<vmem>>, vector<1x8x128xf32>
    %102 = vector.shape_cast %101 : vector<1x8x128xf32> to vector<8x128xf32>
    %103 = vector.shape_cast %100 : vector<8x128xf32> to vector<1x8x128xf32>
    tpu.vector_store %arg5[%c7_70, %c0_71, %c0_72], %103 {strides = array<i32>} : memref<12x8x128xf32, #tpu.memory_space<vmem>>, vector<1x8x128xf32>,
    %c8 = arith.constant 8 : index
    %c0_73 = arith.constant 0 : index
    %c0_74 = arith.constant 0 : index
    %104 = vector.load %arg5[%c8, %c0_73, %c0_74] : memref<12x8x128xf32, #tpu.memory_space<vmem>>, vector<1x8x128xf32>
    %105 = vector.shape_cast %104 : vector<1x8x128xf32> to vector<8x128xf32>
    %cst_75 = arith.constant 0.000000e+00 : f32
    %106 = vector.broadcast %cst_75 : f32 to vector<8x128xf32>
    %107 = arith.select %84, %82, %106 : vector<8x128xi1>, vector<8x128xf32>
    %108 = vector.shape_cast %107 : vector<8x128xf32> to vector<1x8x128xf32>
    %cst_76 = arith.constant dense<0.000000e+00> : vector<8x128xf32>
    %109 = vector.multi_reduction <add>, %108, %cst_76 [0] : vector<1x8x128xf32> to vector<8x128xf32>
    %110 = arith.addf %105, %109 : vector<8x128xf32>
    %c8_77 = arith.constant 8 : index
    %c0_78 = arith.constant 0 : index
    %c0_79 = arith.constant 0 : index
    %111 = vector.load %arg5[%c8_77, %c0_78, %c0_79] : memref<12x8x128xf32, #tpu.memory_space<vmem>>, vector<1x8x128xf32>
    %112 = vector.shape_cast %111 : vector<1x8x128xf32> to vector<8x128xf32>
    %113 = vector.shape_cast %110 : vector<8x128xf32> to vector<1x8x128xf32>
    tpu.vector_store %arg5[%c8_77, %c0_78, %c0_79], %113 {strides = array<i32>} : memref<12x8x128xf32, #tpu.memory_space<vmem>>, vector<1x8x128xf32>,
    %c0_80 = arith.constant 0 : index
    %c3_81 = arith.constant 3 : index
    %114 = arith.index_cast %5 : i32 to index
    %c0_82 = arith.constant 0 : index
    %115 = vector.load %arg2[%c0_80, %c3_81, %114, %c0_82] : memref<1x4x8x128xf32, #tpu.memory_space<vmem>>, vector<1x1x8x128xf32>
    %116 = vector.shape_cast %115 : vector<1x1x8x128xf32> to vector<8x128xf32>
    %117 = math.exp %116 : vector<8x128xf32>
    %c3_i32 = arith.constant 3 : i32
    %118 = vector.broadcast %c3_i32 : i32 to vector<8x128xi32>
    %119 = arith.cmpi eq, %8, %118 : vector<8x128xi32>
    %c9 = arith.constant 9 : index
    %c0_83 = arith.constant 0 : index
    %c0_84 = arith.constant 0 : index
    %120 = vector.load %arg5[%c9, %c0_83, %c0_84] : memref<12x8x128xf32, #tpu.memory_space<vmem>>, vector<1x8x128xf32>
    %121 = vector.shape_cast %120 : vector<1x8x128xf32> to vector<8x128xf32>
    %122 = vector.shape_cast %117 : vector<8x128xf32> to vector<1x8x128xf32>
    %cst_85 = arith.constant dense<0.000000e+00> : vector<8x128xf32>
    %123 = vector.multi_reduction <add>, %122, %cst_85 [0] : vector<1x8x128xf32> to vector<8x128xf32>
    %124 = arith.addf %121, %123 : vector<8x128xf32>
    %c9_86 = arith.constant 9 : index
    %c0_87 = arith.constant 0 : index
    %c0_88 = arith.constant 0 : index
    %125 = vector.load %arg5[%c9_86, %c0_87, %c0_88] : memref<12x8x128xf32, #tpu.memory_space<vmem>>, vector<1x8x128xf32>
    %126 = vector.shape_cast %125 : vector<1x8x128xf32> to vector<8x128xf32>
    %127 = vector.shape_cast %124 : vector<8x128xf32> to vector<1x8x128xf32>
    tpu.vector_store %arg5[%c9_86, %c0_87, %c0_88], %127 {strides = array<i32>} : memref<12x8x128xf32, #tpu.memory_space<vmem>>, vector<1x8x128xf32>,
    %c10 = arith.constant 10 : index
    %c0_89 = arith.constant 0 : index
    %c0_90 = arith.constant 0 : index
    %128 = vector.load %arg5[%c10, %c0_89, %c0_90] : memref<12x8x128xf32, #tpu.memory_space<vmem>>, vector<1x8x128xf32>
    %129 = vector.shape_cast %128 : vector<1x8x128xf32> to vector<8x128xf32>
    %cst_91 = arith.constant 1.000000e+00 : f32
    %cst_92 = arith.constant 0.000000e+00 : f32
    %130 = vector.broadcast %cst_91 : f32 to vector<8x128xf32>
    %131 = vector.broadcast %cst_92 : f32 to vector<8x128xf32>
    %132 = arith.select %119, %130, %131 : vector<8x128xi1>, vector<8x128xf32>
    %133 = vector.shape_cast %132 : vector<8x128xf32> to vector<1x8x128xf32>
    %cst_93 = arith.constant dense<0.000000e+00> : vector<8x128xf32>
    %134 = vector.multi_reduction <add>, %133, %cst_93 [0] : vector<1x8x128xf32> to vector<8x128xf32>
    %135 = arith.addf %129, %134 : vector<8x128xf32>
    %c10_94 = arith.constant 10 : index
    %c0_95 = arith.constant 0 : index
    %c0_96 = arith.constant 0 : index
    %136 = vector.load %arg5[%c10_94, %c0_95, %c0_96] : memref<12x8x128xf32, #tpu.memory_space<vmem>>, vector<1x8x128xf32>
    %137 = vector.shape_cast %136 : vector<1x8x128xf32> to vector<8x128xf32>
    %138 = vector.shape_cast %135 : vector<8x128xf32> to vector<1x8x128xf32>
    tpu.vector_store %arg5[%c10_94, %c0_95, %c0_96], %138 {strides = array<i32>} : memref<12x8x128xf32, #tpu.memory_space<vmem>>, vector<1x8x128xf32>,
    %c11 = arith.constant 11 : index
    %c0_97 = arith.constant 0 : index
    %c0_98 = arith.constant 0 : index
    %139 = vector.load %arg5[%c11, %c0_97, %c0_98] : memref<12x8x128xf32, #tpu.memory_space<vmem>>, vector<1x8x128xf32>
    %140 = vector.shape_cast %139 : vector<1x8x128xf32> to vector<8x128xf32>
    %cst_99 = arith.constant 0.000000e+00 : f32
    %141 = vector.broadcast %cst_99 : f32 to vector<8x128xf32>
    %142 = arith.select %119, %117, %141 : vector<8x128xi1>, vector<8x128xf32>
    %143 = vector.shape_cast %142 : vector<8x128xf32> to vector<1x8x128xf32>
    %cst_100 = arith.constant dense<0.000000e+00> : vector<8x128xf32>
    %144 = vector.multi_reduction <add>, %143, %cst_100 [0] : vector<1x8x128xf32> to vector<8x128xf32>
    %145 = arith.addf %140, %144 : vector<8x128xf32>
    %c11_101 = arith.constant 11 : index
    %c0_102 = arith.constant 0 : index
    %c0_103 = arith.constant 0 : index
    %146 = vector.load %arg5[%c11_101, %c0_102, %c0_103] : memref<12x8x128xf32, #tpu.memory_space<vmem>>, vector<1x8x128xf32>
    %147 = vector.shape_cast %146 : vector<1x8x128xf32> to vector<8x128xf32>
    %148 = vector.shape_cast %145 : vector<8x128xf32> to vector<1x8x128xf32>
    tpu.vector_store %arg5[%c11_101, %c0_102, %c0_103], %148 {strides = array<i32>} : memref<12x8x128xf32, #tpu.memory_space<vmem>>, vector<1x8x128xf32>,
    %c1_i32_104 = arith.constant 1 : i32
    %c0_105 = arith.constant 0 : index
    %c0_106 = arith.constant 0 : index
    %c0_107 = arith.constant 0 : index
    %149 = vector.load %arg5[%c0_105, %c0_106, %c0_107] : memref<12x8x128xf32, #tpu.memory_space<vmem>>, vector<12x8x128xf32>
    %cst_108 = arith.constant dense<0.000000e+00> : vector<12x128xf32>
    %150 = vector.multi_reduction <add>, %149, %cst_108 [1] : vector<12x8x128xf32> to vector<12x128xf32>
    %c0_109 = arith.constant 0 : index
    %c0_110 = arith.constant 0 : index
    %c0_111 = arith.constant 0 : index
    %c0_112 = arith.constant 0 : index
    %151 = vector.load %arg4[%c0_109, %c0_110, %c0_111, %c0_112] : memref<1x1x12x128xf32, #tpu.memory_space<vmem>>, vector<1x1x12x128xf32>
    %152 = vector.shape_cast %151 : vector<1x1x12x128xf32> to vector<12x128xf32>
    %153 = vector.shape_cast %150 : vector<12x128xf32> to vector<1x1x12x128xf32>
    tpu.vector_store %arg4[%c0_109, %c0_110, %c0_111, %c0_112], %153 {strides = array<i32>} : memref<1x1x12x128xf32, #tpu.memory_space<vmem>>, vector<1x1x12x128xf32>,
    return
  }
  func.func @transform_0(%arg0: i32, %arg1: i32) -> (i32, i32, i32, i32) {
    %c0_i32 = arith.constant 0 : i32
    %c0_i32_0 = arith.constant 0 : i32
    %c0_i32_1 = arith.constant 0 : i32
    return %arg0, %c0_i32, %arg1, %c0_i32_0 : i32, i32, i32, i32
  }
  func.func @transform_1(%arg0: i32, %arg1: i32) -> (i32, i32, i32) {
    %c0_i32 = arith.constant 0 : i32
    %c0_i32_0 = arith.constant 0 : i32
    return %arg0, %arg1, %c0_i32 : i32, i32, i32
  }
  func.func @transform_2(%arg0: i32, %arg1: i32) -> (i32, i32, i32, i32) {
    %c0_i32 = arith.constant 0 : i32
    %c0_i32_0 = arith.constant 0 : i32
    %c0_i32_1 = arith.constant 0 : i32
    return %arg0, %arg1, %c0_i32, %c0_i32_0 : i32, i32, i32, i32
  }
}

</mosaic_0001>

<llo_original>
// kernel: tpu_custom_call.1
$region0: #{tpu_custom_call.1}
  #allocation0 [shape = 'u32[]', space=smem, size = 0x4, offset = 0x4, fixed_abs, tag = 'smem constant byte address 0x4 - core index']
  #allocation1 [shape = 'u32[72,128]{1,0:T(1,128)}', space=vmem, size = 0x9000, scoped, tag = 'internal scratch']
  #allocation2 [shape = 'f32[12,8,128]{2,1,0:T(8,128)}', space=vmem, size = 0xc000, scoped, tag = 'scratch operand']
  %s0 = inlined_call_operand.hbm [shape: f32[2,4,8,128], index: 0, kind: input, shape index: {}]
  %s1 = inlined_call_operand.hbm [shape: s32[2,8,128], index: 1, kind: input, shape index: {}]
  %s2 = inlined_call_operand.vmem [shape: f32[2,1,12,128], index: 2, kind: output, shape index: {}]
  %s3 = sld [smem:[#allocation0]]
  $region49: #{tpu_custom_call.1} parent=0
    _
  %s5 = ssub.s32 1, %s3
  %s6 = scalar_select 0, %s5, %s3
  $region1: #{tpu_custom_call.1} parent=0
    #allocation3 [shape = 'u8[32768]{0}', space=vmem, size = 0x8000, scoped, tag = 'input window, operand 0']
    #allocation4 [shape = 's32[2]{0}', space=sflag, size = 0x8, scoped, tag = 'scoped memory for tpu_custom_call.1']
    #allocation5 [shape = 'u8[8192]{0}', space=vmem, size = 0x2000, scoped, tag = 'input window, operand 1']
    #allocation6 [shape = 's32[2]{0}', space=sflag, size = 0x8, scoped, tag = 'scoped memory for tpu_custom_call.1']
    %7 = vsyncpa [#allocation4], 0
    %s8 = scalar_lea.sflag [#allocation4], 1
    %9 = vsyncpa %s8, 0
    %10 = vsyncpa [#allocation6], 0
    %s11 = scalar_lea.sflag [#allocation6], 1
    %12 = vsyncpa %s11, 0
    loop: start=0, step=1, limit=4
    $region2: #{tpu_custom_call.1} parent=1 // loop_pre_header
      _
    $region3: #{tpu_custom_call.1} parent=1 // loop_header
      %s14 = sphi 0, %s18
      %p15 = scmp.ge.s32.totalorder %s14, 4
      %s21 = sphi 0, %s33
      %s22 = sphi 0, %s29
      %s23 = sphi 0, %s21
      %s24 = sphi 0, %s22
      %s25 = sphi 0, %s23
      %s26 = sphi 0, %s24
      %s38 = sphi 0, %s40
      %s41 = sphi 0, %s38
      %s42 = sphi 0, %s41
      %s58 = sphi 0, %s42
      %s66 = sphi 0, %s68
      %s69 = sphi 0, %s66
      %s70 = sphi 0, %s69
      %s86 = sphi 0, %s70
      %s94 = sphi 0, %s96
      %s97 = sphi 0, %s94
      %s98 = sphi 0, %s97
      %s114 = sphi 0, %s98
    $region4: #{tpu_custom_call.1} parent=1 // loop_header_branch
      %17 = sbr.rel (%p15) target = $region8
    $region5: #{tpu_custom_call.1} parent=1 // loop_body
      %s19 = ssub.s32 %s14, 1
      %s20 = ssub.s32 %s14, 2
      %s27 = sadd.s32 1, %s22
      %p28 = scmp.ge.s32.totalorder %s27, 1
      %s29 = scalar_select %p28, 0, %s27
      %s30 = sadd.s32 1, %s21
      %s31 = scalar_select %p28, %s30, %s21
      %p32 = scmp.ge.s32.totalorder %s31, 2
      %s33 = scalar_select %p32, 0, %s31
      %s34 = ssub.s32 %s21, %s33
      %s35 = ssub.s32 %s22, %s29
      %s36 = sor.u32 %s34, %s35
      %p37 = scmp.eq.s32.totalorder %s36, 0
      %s39 = sadd.s32 %s38, 1
      %s40 = scalar_select %p37, %s38, %s39
      %p43 = pneg %p37
      %p44 = scmp.eq.s32.totalorder %s14, 1
      %p45 = por %p43, %p44
      %p46 = scmp.ne.s32.totalorder %s38, %s41
      %p47 = scmp.eq.s32.totalorder %s14, 0
      %p48 = por %p46, %p47
      %p49 = scmp.ne.s32.totalorder %s38, %s41
      %p50 = scmp.eq.s32.totalorder %s19, 1
      %p51 = por %p49, %p50
      %p52 = scmp.ne.s32.totalorder %s41, %s42
      %p53 = scmp.eq.s32.totalorder %s19, 0
      %p54 = por %p52, %p53
      %p55 = scmp.ne.s32.totalorder %s41, %s42
      %p56 = scmp.eq.s32.totalorder %s20, 1
      %p57 = por %p55, %p56
      %p59 = scmp.ne.s32.totalorder %s42, %s58
      %p60 = scmp.eq.s32.totalorder %s20, 0
      %p61 = por %p59, %p60
      %s62 = ssub.s32 %s21, %s33
      %s63 = ssub.s32 %s22, %s29
      %s64 = sor.u32 %s62, %s63
      %p65 = scmp.eq.s32.totalorder %s64, 0
      %s67 = sadd.s32 %s66, 1
      %s68 = scalar_select %p65, %s66, %s67
      %p71 = pneg %p65
      %p72 = scmp.eq.s32.totalorder %s14, 1
      %p73 = por %p71, %p72
      %p74 = scmp.ne.s32.totalorder %s66, %s69
      %p75 = scmp.eq.s32.totalorder %s14, 0
      %p76 = por %p74, %p75
      %p77 = scmp.ne.s32.totalorder %s66, %s69
      %p78 = scmp.eq.s32.totalorder %s19, 1
      %p79 = por %p77, %p78
      %p80 = scmp.ne.s32.totalorder %s69, %s70
      %p81 = scmp.eq.s32.totalorder %s19, 0
      %p82 = por %p80, %p81
      %p83 = scmp.ne.s32.totalorder %s69, %s70
      %p84 = scmp.eq.s32.totalorder %s20, 1
      %p85 = por %p83, %p84
      %p87 = scmp.ne.s32.totalorder %s70, %s86
      %p88 = scmp.eq.s32.totalorder %s20, 0
      %p89 = por %p87, %p88
      %s90 = ssub.s32 %s21, %s33
      %s91 = ssub.s32 %s22, %s29
      %s92 = sor.u32 %s90, %s91
      %p93 = scmp.eq.s32.totalorder %s92, 0
      %s95 = sadd.s32 %s94, 1
      %s96 = scalar_select %p93, %s94, %s95
      %p99 = pneg %p93
      %p100 = scmp.eq.s32.totalorder %s14, 1
      %p101 = por %p99, %p100
      %p102 = scmp.ne.s32.totalorder %s94, %s97
      %p103 = scmp.eq.s32.totalorder %s14, 0
      %p104 = por %p102, %p103
      %p105 = scmp.ne.s32.totalorder %s94, %s97
      %p106 = scmp.eq.s32.totalorder %s19, 1
      %p107 = por %p105, %p106
      %p108 = scmp.ne.s32.totalorder %s97, %s98
      %p109 = scmp.eq.s32.totalorder %s19, 0
      %p110 = por %p108, %p109
      %p111 = scmp.ne.s32.totalorder %s97, %s98
      %p112 = scmp.eq.s32.totalorder %s20, 1
      %p113 = por %p111, %p112
      %p115 = scmp.ne.s32.totalorder %s98, %s114
      %p116 = scmp.eq.s32.totalorder %s20, 0
      %p117 = por %p115, %p116
      %p118 = scmp.le.s32.totalorder 1, %s14
      %p119 = scmp.lt.s32.totalorder %s14, 3
      %p120 = pnand %p118, %p119
      %p121 = pneg %p120
      // Predicated region
      $region9: #{tpu_custom_call.1} parent=5 // pred_check
        _
      $region10: #{tpu_custom_call.1} parent=5 // pred_check_branch
        %123 = sbr.rel (%p120) target = $region12
      $region11: #{tpu_custom_call.1} parent=5 // pred_region
        %s124 = ssub.s32 %s14, 1
      $region12: #{tpu_custom_call.1} parent=5 // pred_fallthru
        _
      %p125 = scmp.lt.s32.totalorder %s14, 2
      // Predicated region
      $region13: #{tpu_custom_call.1} parent=5 // pred_check
        %p126 = pneg %p125
      $region14: #{tpu_custom_call.1} parent=5 // pred_check_branch
        %128 = sbr.rel (%p126) target = $region16
      $region15: #{tpu_custom_call.1} parent=5 // pred_region
        // Predicated region
        $region17: #{tpu_custom_call.1} parent=15 // pred_check
          %p129 = pneg %p48
        $region18: #{tpu_custom_call.1} parent=15 // pred_check_branch
          %131 = sbr.rel (%p129) target = $region20
        $region19: #{tpu_custom_call.1} parent=15 // pred_region
          %s132 = sand.u32 %s38, 1
          %s133 = scalar_lea.sflag [#allocation4], %s132
          %s134 = sand.u32 %s38, 1
          %s135 = smul.addr %s134, 32
          %s136 = scalar_lea.vmem [#allocation3], %s135
          %138 = vsyncadd %s133, 0
          %s139 = smul.addr %s21, 4
          %s140 = sadd.s32 %s22, %s139
          %s141 = smul.addr %s140, 8
          %s142 = scalar_lea.hbm %s0, %s141
          %s143 = sshll.u32 %s142, 4
          %s144 = int_to_ptr.hbm [resolvable:$true] %s143
          %s145 = sshll.u32 %s136, 4
          %s146 = int_to_ptr.vmem [resolvable:$true] %s145
          %151 = dma.hbm_to_vmem [thread:$0]  %s144, 512, %s146, %s133, 128, 128, 8
        $region20: #{tpu_custom_call.1} parent=15 // pred_fallthru
          _
        // Predicated region
        $region21: #{tpu_custom_call.1} parent=15 // pred_check
          %p152 = pneg %p76
        $region22: #{tpu_custom_call.1} parent=15 // pred_check_branch
          %154 = sbr.rel (%p152) target = $region24
        $region23: #{tpu_custom_call.1} parent=15 // pred_region
          %s155 = sand.u32 %s66, 1
          %s156 = scalar_lea.sflag [#allocation6], %s155
          %s157 = sand.u32 %s66, 1
          %s158 = smul.addr %s157, 8
          %s159 = scalar_lea.vmem [#allocation5], %s158
          %161 = vsyncadd %s156, 0
          %s162 = sadd.s32 %s22, %s21
          %s163 = smul.addr %s162, 8
          %s164 = scalar_lea.hbm %s1, %s163
          %s166 = sshll.u32 %s164, 4
          %s167 = int_to_ptr.hbm [resolvable:$true] %s166
          %s168 = sshll.u32 %s159, 4
          %s169 = int_to_ptr.vmem [resolvable:$true] %s168
          %171 = dma.hbm_to_vmem [thread:$0]  %s167, 128, %s169, %s156
        $region24: #{tpu_custom_call.1} parent=15 // pred_fallthru
          _
      $region16: #{tpu_custom_call.1} parent=5 // pred_fallthru
        _
      %p172 = scmp.le.s32.totalorder 1, %s14
      %p173 = scmp.lt.s32.totalorder %s14, 3
      %p174 = pnand %p172, %p173
      %p175 = pneg %p174
      // Predicated region
      $region25: #{tpu_custom_call.1} parent=5 // pred_check
        _
      $region26: #{tpu_custom_call.1} parent=5 // pred_check_branch
        %177 = sbr.rel (%p174) target = $region28
      $region27: #{tpu_custom_call.1} parent=5 // pred_region
        %s178 = ssub.s32 %s14, 1
        %s179 = sand.u32 %s41, 1
        %s180 = scalar_lea.sflag [#allocation4], %s179
        %s181 = sand.u32 %s41, 1
        %s182 = smul.addr %s181, 32
        %s183 = scalar_lea.vmem [#allocation3], %s182
        // Predicated region
        $region29: #{tpu_custom_call.1} parent=27 // pred_check
          %p184 = pneg %p54
        $region30: #{tpu_custom_call.1} parent=27 // pred_check_branch
          %186 = sbr.rel (%p184) target = $region32
        $region31: #{tpu_custom_call.1} parent=27 // pred_region
          %188 = dma.done %s180, 512
        $region32: #{tpu_custom_call.1} parent=27 // pred_fallthru
          _
        %s189 = sand.u32 %s69, 1
        %s190 = scalar_lea.sflag [#allocation6], %s189
        %s191 = sand.u32 %s69, 1
        %s192 = smul.addr %s191, 8
        %s193 = scalar_lea.vmem [#allocation5], %s192
        // Predicated region
        $region33: #{tpu_custom_call.1} parent=27 // pred_check
          %p194 = pneg %p82
        $region34: #{tpu_custom_call.1} parent=27 // pred_check_branch
          %196 = sbr.rel (%p194) target = $region36
        $region35: #{tpu_custom_call.1} parent=27 // pred_region
          %198 = dma.done %s190, 128
        $region36: #{tpu_custom_call.1} parent=27 // pred_fallthru
          _
        %s199 = sand.u32 %s41, 1
        %s200 = scalar_lea.sflag [#allocation4], %s199
        %s201 = sand.u32 %s41, 1
        %s202 = smul.addr %s201, 32
        %s203 = scalar_lea.vmem [#allocation3], %s202
        %p204 = pneg %p54
        %p205 = pneg %p51
        %s206 = sand.u32 %s69, 1
        %s207 = scalar_lea.sflag [#allocation6], %s206
        %s208 = sand.u32 %s69, 1
        %s209 = smul.addr %s208, 8
        %s210 = scalar_lea.vmem [#allocation5], %s209
        %p211 = pneg %p82
        %p212 = pneg %p79
        %p213 = pneg %p110
        %p214 = pneg %p107
        %p215 = scmp.lt.s32.totalorder %s23, 1
        %s216 = scalar_select %p215, %s23, 1
        %p217 = scmp.lt.s32.totalorder %s24, 0
        %s218 = scalar_select %p217, %s24, 0
        %s219 = smul.addr %s218, 2
        %s220 = smul.addr %s216, 2
        %s221 = sadd.s32 %s219, %s220
        %s222 = smul.addr %s221, 8
        %s223 = scalar_lea.vmem %s2, %s222
        %p224 = scmp.lt.s32.totalorder %s23, 1
        %s225 = scalar_select %p224, %s23, 1
        %p226 = scmp.lt.s32.totalorder %s24, 0
        %s227 = scalar_select %p226, %s24, 0
        %s228 = smul.addr %s227, 2
        %s229 = smul.addr %s225, 2
        %s230 = sadd.s32 %s228, %s229
        %s231 = smul.addr %s230, 8
        %s232 = scalar_lea.vmem %s2, %s231
        %233 = vst [vmem:[#allocation2] sm:$0xff] 0.0
        %234 = vst [vmem:[#allocation2 + $0x8] sm:$0xff] 0.0
        %235 = vst [vmem:[#allocation2 + $0x10] sm:$0xff] 0.0
        %236 = vst [vmem:[#allocation2 + $0x18] sm:$0xff] 0.0
        %237 = vst [vmem:[#allocation2 + $0x20] sm:$0xff] 0.0
        %238 = vst [vmem:[#allocation2 + $0x28] sm:$0xff] 0.0
        %239 = vst [vmem:[#allocation2 + $0x30] sm:$0xff] 0.0
        %240 = vst [vmem:[#allocation2 + $0x38] sm:$0xff] 0.0
        %241 = vst [vmem:[#allocation2 + $0x40] sm:$0xff] 0.0
        %242 = vst [vmem:[#allocation2 + $0x48] sm:$0xff] 0.0
        %243 = vst [vmem:[#allocation2 + $0x50] sm:$0xff] 0.0
        %244 = vst [vmem:[#allocation2 + $0x58] sm:$0xff] 0.0
        %v245 = vld [vmem:[%s193] sm:$0xff]
        %v246 = vld [vmem:[%s183] sm:$0xff]
        %v247 = vmul.f32 %v246, 1.442695
        %v248 = vpow.pop %v247
        %vm249 = vcmp.eq.s32.totalorder %v245, 0
        %v250 = vld [vmem:[#allocation2] sm:$0xff]
        %v251 = vadd.f32 %v248, 0.0
        %v252 = vadd.f32 %v250, %v251
        %253 = vst [vmem:[#allocation2] sm:$0xff] %v252
        %s254 = scalar_lea.vmem [#allocation2], 8
        %v255 = vld [vmem:[%s254] sm:$0xff]
        %v256 = vsel %vm249, 1.0, 0.0
        %v257 = vadd.f32 %v256, 0.0
        %v258 = vadd.f32 %v255, %v257
        %259 = vst [vmem:[%s254] sm:$0xff] %v258
        %s260 = scalar_lea.vmem [#allocation2], 16
        %v261 = vld [vmem:[%s260] sm:$0xff]
        %v262 = vsel %vm249, %v248, 0.0
        %v263 = vadd.f32 %v262, 0.0
        %v264 = vadd.f32 %v261, %v263
        %265 = vst [vmem:[%s260] sm:$0xff] %v264
        %s266 = sadd.s32 0, 8
        %s267 = scalar_lea.vmem %s183, %s266 [#allocation3]
        %v268 = vld [vmem:[%s267] sm:$0xff]
        %v269 = vmul.f32 %v268, 1.442695
        %v270 = vpow.pop %v269
        %vm271 = vcmp.eq.s32.totalorder %v245, 1
        %s272 = scalar_lea.vmem [#allocation2], 24
        %v273 = vld [vmem:[%s272] sm:$0xff]
        %v274 = vadd.f32 %v270, 0.0
        %v275 = vadd.f32 %v273, %v274
        %276 = vst [vmem:[%s272] sm:$0xff] %v275
        %s277 = scalar_lea.vmem [#allocation2], 32
        %v278 = vld [vmem:[%s277] sm:$0xff]
        %v279 = vsel %vm271, 1.0, 0.0
        %v280 = vadd.f32 %v279, 0.0
        %v281 = vadd.f32 %v278, %v280
        %282 = vst [vmem:[%s277] sm:$0xff] %v281
        %s283 = scalar_lea.vmem [#allocation2], 40
        %v284 = vld [vmem:[%s283] sm:$0xff]
        %v285 = vsel %vm271, %v270, 0.0
        %v286 = vadd.f32 %v285, 0.0
        %v287 = vadd.f32 %v284, %v286
        %288 = vst [vmem:[%s283] sm:$0xff] %v287
        %s289 = sadd.s32 0, 16
        %s290 = scalar_lea.vmem %s183, %s289 [#allocation3]
        %v291 = vld [vmem:[%s290] sm:$0xff]
        %v292 = vmul.f32 %v291, 1.442695
        %v293 = vpow.pop %v292
        %vm294 = vcmp.eq.s32.totalorder %v245, 2
        %s295 = scalar_lea.vmem [#allocation2], 48
        %v296 = vld [vmem:[%s295] sm:$0xff]
        %v297 = vadd.f32 %v293, 0.0
        %v298 = vadd.f32 %v296, %v297
        %299 = vst [vmem:[%s295] sm:$0xff] %v298
        %s300 = scalar_lea.vmem [#allocation2], 56
        %v301 = vld [vmem:[%s300] sm:$0xff]
        %v302 = vsel %vm294, 1.0, 0.0
        %v303 = vadd.f32 %v302, 0.0
        %v304 = vadd.f32 %v301, %v303
        %305 = vst [vmem:[%s300] sm:$0xff] %v304
        %s306 = scalar_lea.vmem [#allocation2], 64
        %v307 = vld [vmem:[%s306] sm:$0xff]
        %v308 = vsel %vm294, %v293, 0.0
        %v309 = vadd.f32 %v308, 0.0
        %v310 = vadd.f32 %v307, %v309
        %311 = vst [vmem:[%s306] sm:$0xff] %v310
        %s312 = sadd.s32 0, 24
        %s313 = scalar_lea.vmem %s183, %s312 [#allocation3]
        %v314 = vld [vmem:[%s313] sm:$0xff]
        %v315 = vmul.f32 %v314, 1.442695
        %v316 = vpow.pop %v315
        %vm317 = vcmp.eq.s32.totalorder %v245, 3
        %s318 = scalar_lea.vmem [#allocation2], 72
        %v319 = vld [vmem:[%s318] sm:$0xff]
        %v320 = vadd.f32 %v316, 0.0
        %v321 = vadd.f32 %v319, %v320
        %322 = vst [vmem:[%s318] sm:$0xff] %v321
        %s323 = scalar_lea.vmem [#allocation2], 80
        %v324 = vld [vmem:[%s323] sm:$0xff]
        %v325 = vsel %vm317, 1.0, 0.0
        %v326 = vadd.f32 %v325, 0.0
        %v327 = vadd.f32 %v324, %v326
        %328 = vst [vmem:[%s323] sm:$0xff] %v327
        %s329 = scalar_lea.vmem [#allocation2], 88
        %v330 = vld [vmem:[%s329] sm:$0xff]
        %v331 = vsel %vm317, %v316, 0.0
        %v332 = vadd.f32 %v331, 0.0
        %v333 = vadd.f32 %v330, %v332
        %334 = vst [vmem:[%s329] sm:$0xff] %v333
        %v335 = vld [vmem:[#allocation2] sm:$0xff]
        %v336 = vld [vmem:[#allocation2 + $0x8] sm:$0xff]
        %v337 = vld [vmem:[#allocation2 + $0x10] sm:$0xff]
        %v338 = vld [vmem:[#allocation2 + $0x18] sm:$0xff]
        %v339 = vld [vmem:[#allocation2 + $0x20] sm:$0xff]
        %v340 = vld [vmem:[#allocation2 + $0x28] sm:$0xff]
        %v341 = vld [vmem:[#allocation2 + $0x30] sm:$0xff]
        %v342 = vld [vmem:[#allocation2 + $0x38] sm:$0xff]
        %v343 = vld [vmem:[#allocation2 + $0x40] sm:$0xff]
        %v344 = vld [vmem:[#allocation2 + $0x48] sm:$0xff]
        %v345 = vld [vmem:[#allocation2 + $0x50] sm:$0xff]
        %v346 = vld [vmem:[#allocation2 + $0x58] sm:$0xff]
        %v347 = vrot.slane %v335, 4
        %v348 = vadd.f32 %v335, %v347
        %v349 = vrot.slane %v348, 2
        %v350 = vadd.f32 %v348, %v349
        %v351 = vrot.slane %v350, 1
        %v352 = vadd.f32 %v350, %v351
        %v353 = vrot.slane %v336, 4
        %v354 = vadd.f32 %v336, %v353
        %v355 = vrot.slane %v354, 2
        %v356 = vadd.f32 %v354, %v355
        %v357 = vrot.slane %v356, 1
        %v358 = vadd.f32 %v356, %v357
        %v359 = vrot.slane %v337, 4
        %v360 = vadd.f32 %v337, %v359
        %v361 = vrot.slane %v360, 2
        %v362 = vadd.f32 %v360, %v361
        %v363 = vrot.slane %v362, 1
        %v364 = vadd.f32 %v362, %v363
        %v365 = vrot.slane %v338, 4
        %v366 = vadd.f32 %v338, %v365
        %v367 = vrot.slane %v366, 2
        %v368 = vadd.f32 %v366, %v367
        %v369 = vrot.slane %v368, 1
        %v370 = vadd.f32 %v368, %v369
        %v371 = vrot.slane %v339, 4
        %v372 = vadd.f32 %v339, %v371
        %v373 = vrot.slane %v372, 2
        %v374 = vadd.f32 %v372, %v373
        %v375 = vrot.slane %v374, 1
        %v376 = vadd.f32 %v374, %v375
        %v377 = vrot.slane %v340, 4
        %v378 = vadd.f32 %v340, %v377
        %v379 = vrot.slane %v378, 2
        %v380 = vadd.f32 %v378, %v379
        %v381 = vrot.slane %v380, 1
        %v382 = vadd.f32 %v380, %v381
        %v383 = vrot.slane %v341, 4
        %v384 = vadd.f32 %v341, %v383
        %v385 = vrot.slane %v384, 2
        %v386 = vadd.f32 %v384, %v385
        %v387 = vrot.slane %v386, 1
        %v388 = vadd.f32 %v386, %v387
        %v389 = vrot.slane %v342, 4
        %v390 = vadd.f32 %v342, %v389
        %v391 = vrot.slane %v390, 2
        %v392 = vadd.f32 %v390, %v391
        %v393 = vrot.slane %v392, 1
        %v394 = vadd.f32 %v392, %v393
        %v395 = vrot.slane %v343, 4
        %v396 = vadd.f32 %v343, %v395
        %v397 = vrot.slane %v396, 2
        %v398 = vadd.f32 %v396, %v397
        %v399 = vrot.slane %v398, 1
        %v400 = vadd.f32 %v398, %v399
        %v401 = vrot.slane %v344, 4
        %v402 = vadd.f32 %v344, %v401
        %v403 = vrot.slane %v402, 2
        %v404 = vadd.f32 %v402, %v403
        %v405 = vrot.slane %v404, 1
        %v406 = vadd.f32 %v404, %v405
        %v407 = vrot.slane %v345, 4
        %v408 = vadd.f32 %v345, %v407
        %v409 = vrot.slane %v408, 2
        %v410 = vadd.f32 %v408, %v409
        %v411 = vrot.slane %v410, 1
        %v412 = vadd.f32 %v410, %v411
        %v413 = vrot.slane %v346, 4
        %v414 = vadd.f32 %v346, %v413
        %v415 = vrot.slane %v414, 2
        %v416 = vadd.f32 %v414, %v415
        %v417 = vrot.slane %v416, 1
        %v418 = vadd.f32 %v416, %v417
        %vm431 = vcmask 1041409
        %v432 = vsel %vm431, %v358, %v352
        %vm433 = vcmask 1042434
        %v434 = vsel %vm433, %v364, %v432
        %vm435 = vcmask 1043459
        %v436 = vsel %vm435, %v370, %v434
        %vm437 = vcmask 1044484
        %v438 = vsel %vm437, %v376, %v436
        %vm439 = vcmask 1045509
        %v440 = vsel %vm439, %v382, %v438
        %vm441 = vcmask 1046534
        %v442 = vsel %vm441, %v388, %v440
        %vm443 = vcmask 1047559
        %v444 = vsel %vm443, %v394, %v442
        %v445 = vsel %vm431, %v406, %v400
        %v446 = vsel %vm433, %v412, %v445
        %v447 = vsel %vm435, %v418, %v446
        %450 = vst [vmem:[%s232] sm:$0xff] %v444
        %451 = vst [vmem:[%s232 + $0x8] sm:$0xf] %v447
        %p452 = scmp.lt.s32.totalorder %s23, 1
        %s453 = scalar_select %p452, %s23, 1
        %p454 = scmp.lt.s32.totalorder %s24, 0
        %s455 = scalar_select %p454, %s24, 0
        %s456 = smul.addr %s455, 2
        %s457 = smul.addr %s453, 2
        %s458 = sadd.s32 %s456, %s457
        %s459 = smul.addr %s458, 8
        %s460 = scalar_lea.vmem %s2, %s459
        // Predicated region
        $region37: #{tpu_custom_call.1} parent=27 // pred_check
          %p461 = pneg %p107
        $region38: #{tpu_custom_call.1} parent=27 // pred_check_branch
          %463 = sbr.rel (%p461) target = $region40
        $region39: #{tpu_custom_call.1} parent=27 // pred_region
          _
        $region40: #{tpu_custom_call.1} parent=27 // pred_fallthru
          _
      $region28: #{tpu_custom_call.1} parent=5 // pred_fallthru
        _
      %p464 = scmp.le.s32.totalorder 2, %s14
      // Predicated region
      $region41: #{tpu_custom_call.1} parent=5 // pred_check
        %p465 = pneg %p464
      $region42: #{tpu_custom_call.1} parent=5 // pred_check_branch
        %467 = sbr.rel (%p465) target = $region44
      $region43: #{tpu_custom_call.1} parent=5 // pred_region
        %s468 = ssub.s32 %s14, 2
        // Predicated region
        $region45: #{tpu_custom_call.1} parent=43 // pred_check
          %p469 = pneg %p113
        $region46: #{tpu_custom_call.1} parent=43 // pred_check_branch
          %471 = sbr.rel (%p469) target = $region48
        $region47: #{tpu_custom_call.1} parent=43 // pred_region
          %p472 = scmp.lt.s32.totalorder %s25, 1
          %s473 = scalar_select %p472, %s25, 1
          %p474 = scmp.lt.s32.totalorder %s26, 0
          %s475 = scalar_select %p474, %s26, 0
          %s476 = smul.addr %s475, 2
          %s477 = smul.addr %s473, 2
          %s478 = sadd.s32 %s476, %s477
          %s479 = smul.addr %s478, 8
          %s480 = scalar_lea.vmem %s2, %s479
        $region48: #{tpu_custom_call.1} parent=43 // pred_fallthru
          _
      $region44: #{tpu_custom_call.1} parent=5 // pred_fallthru
        _
    $region6: #{tpu_custom_call.1} parent=1 // loop_footer
      %s18 = sadd.s32 1, %s14
    $region7: #{tpu_custom_call.1} parent=1 // loop_footer_branch
      %13 = sbr.rel target = $region3
    $region8: #{tpu_custom_call.1} parent=1 // loop_exit
      _
    %481 = vsyncpa [#allocation4], 1
    %s482 = scalar_lea.sflag [#allocation4], 1
    %483 = vsyncpa %s482, 1
    %484 = vsyncpa [#allocation6], 1
    %s485 = scalar_lea.sflag [#allocation6], 1
    %486 = vsyncpa %s485, 1

</llo_original>
